<compile_context>
chip_gen: v6e
topology: v6e:2x2x1
jax: 0.10.0
libtpu: 0.0.40
codegen_flags: <defaults>
</compile_context>

<pallas_src>
import jax
import jax.numpy as jnp
from jax import lax
from jax.experimental import pallas as pl
from jax.experimental.pallas import tpu as pltpu


_SQRT_HALF = 0.7071067811865476


def _gelu_erf(v):
    # (v * 0.5) * (erf(v * 0.7071067811865476) + 1) -- exact match of the graph.
    return (v * 0.5) * (lax.erf(v * _SQRT_HALF) + 1.0)


def mlp_gelu_kernel(xt_ref, w1_ref, b1_ref, w2_ref, b2_ref, w3_ref, b3_ref, ot_ref):
    # xt_ref: (64, tb)   w*: (out, in)   b*: (out, 1)   ot_ref: (8, tb)
    xt = xt_ref[...]

    v1 = jnp.dot(w1_ref[...], xt, preferred_element_type=jnp.float32) + b1_ref[...]
    h1 = _gelu_erf(v1)                                              # (32, tb) f32

    v7 = jnp.dot(w2_ref[...], h1, preferred_element_type=jnp.float32) + b2_ref[...]
    h2 = _gelu_erf(v7)                                              # (16, tb) f32

    v13 = jnp.dot(w3_ref[...], h2, preferred_element_type=jnp.float32) + b3_ref[...]
    ot_ref[...] = _gelu_erf(v13).astype(ot_ref.dtype)               # (8, tb)


def _round_up(n, m):
    return -(-n // m) * m


def _pick_batch_tile(batch, tile_b):
    """Batch tile along the lane axis: multiple of 128 (or == batch when tiny),
    aiming for >= 2 grid steps so v7x's two TensorCores both get work."""
    if batch <= 128:
        return batch                      # single partial/full block, == array dim
    tb = min(tile_b, _round_up(-(-batch // 2), 128))
    tb = max(128, (tb // 128) * 128)
    return tb


def mlp_gelu_t(xt, w1, b1, w2, b2, w3, b3, *, tile_b=8192):
    """Transposed entry point: xt is (64, B); returns (8, B)."""
    in_dim, batch = xt.shape
    out_dim = w3.shape[0]

    tb = _pick_batch_tile(batch, tile_b)
    grid = (pl.cdiv(batch, tb),)

    def resident(a):
        # Whole-array block, same block every grid step -> stays VMEM-resident.
        return pl.BlockSpec(a.shape, lambda i: (0,) * a.ndim)

    return pl.pallas_call(
        mlp_gelu_kernel,
        out_shape=jax.ShapeDtypeStruct((out_dim, batch), xt.dtype),
        grid=grid,
        in_specs=[
            pl.BlockSpec((in_dim, tb), lambda i: (0, i)),   # x^T streamed by lanes
            resident(w1), resident(b1),
            resident(w2), resident(b2),
            resident(w3), resident(b3),
        ],
        out_specs=pl.BlockSpec((out_dim, tb), lambda i: (0, i)),
        compiler_params=pltpu.CompilerParams(dimension_semantics=("parallel",)),
    )(xt, w1, b1, w2, b2, w3, b3)


def mlp_gelu(x, w1, b1, w2, b2, w3, b3, *, tile_b=8192):
    """PyTorch-semantics entry point: x is (B, 64); returns (B, 8).

    The transposes here are one-time layout plumbing (x is only 64 features
    wide, the output only 8); callers that already hold (feat, batch) data
    should call mlp_gelu_t directly and skip them.
    """
    yt = mlp_gelu_t(jnp.transpose(x), w1, b1, w2, b2, w3, b3, tile_b=tile_b)
    return jnp.transpose(yt)


def _init_linear(key, in_f, out_f):
    # Deterministic init mirroring nn.Linear's uniform(-1/sqrt(in), 1/sqrt(in)).
    # Weight kept in PyTorch's (out, in) layout; bias as (out, 1) for lane
    # broadcast inside the kernel.
    kw, kb = jax.random.split(key)
    bound = 1.0 / (in_f ** 0.5)
    w = jax.random.uniform(kw, (out_f, in_f), jnp.float32, -bound, bound)
    b = jax.random.uniform(kb, (out_f, 1), jnp.float32, -bound, bound)
    return w, b


def reference(x, w1, b1, w2, b2, w3, b3):
    g = lambda v: (v * 0.5) * (lax.erf(v * _SQRT_HALF) + 1.0)
    h = g(x @ w1.T + b1[:, 0])
    h = g(h @ w2.T + b2[:, 0])
    return g(h @ w3.T + b3[:, 0])


if __name__ == "__main__":
    key = jax.random.PRNGKey(0)
    kx, kxb, k1, k2, k3 = jax.random.split(key, 5)

    w1, b1 = _init_linear(k1, 64, 32)
    w2, b2 = _init_linear(k2, 32, 16)
    w3, b3 = _init_linear(k3, 16, 8)

    # Case 1: the module's actual shape, torch.randn(1, 64).
    x1 = jax.random.normal(kx, (1, 64), jnp.float32)
    out1 = jax.block_until_ready(mlp_gelu(x1, w1, b1, w2, b2, w3, b3))
    ref1 = reference(x1, w1, b1, w2, b2, w3, b3)
    assert out1.shape == (1, 8)
    assert jnp.allclose(out1, ref1, atol=1e-5, rtol=1e-5)

    # Case 2: multi-step grid with a ragged (masked) last block: B=200 ->
    # tb=128, grid=(2,), second block is partial (72 valid lanes).
    xb = jax.random.normal(kxb, (200, 64), jnp.float32)
    out2 = jax.block_until_ready(mlp_gelu(xb, w1, b1, w2, b2, w3, b3))
    ref2 = reference(xb, w1, b1, w2, b2, w3, b3)
    assert out2.shape == (200, 8)
    assert jnp.allclose(out2, ref2, atol=1e-5, rtol=1e-5)

    print("KERNEL_OK")
</pallas_src>

<mosaic_0001>
module attributes {stable_mosaic.version = 11 : i64} {
  func.func @mlp_gelu_kernel(%arg0: i32, %arg1: memref<64x1xf32, #tpu.memory_space<vmem>>, %arg2: memref<32x64xf32, #tpu.memory_space<vmem>>, %arg3: memref<32x1xf32, #tpu.memory_space<vmem>>, %arg4: memref<16x32xf32, #tpu.memory_space<vmem>>, %arg5: memref<16x1xf32, #tpu.memory_space<vmem>>, %arg6: memref<8x16xf32, #tpu.memory_space<vmem>>, %arg7: memref<8x1xf32, #tpu.memory_space<vmem>>, %arg8: memref<8x1xf32, #tpu.memory_space<vmem>>) attributes {dimension_semantics = [#tpu.dimension_semantics<parallel>], iteration_bounds = array<i64: 1>, scalar_prefetch = 0 : i64, scratch_operands = 0 : i64, tpu.core_type = #tpu.core_type<tc>, window_params = [{transform_indices = @transform_0, window_bounds = array<i64: 64, 1>}, {pipeline_mode = #tpu.pipeline_mode<synchronous>, transform_indices = @transform_1, window_bounds = array<i64: 32, 64>}, {pipeline_mode = #tpu.pipeline_mode<synchronous>, transform_indices = @transform_2, window_bounds = array<i64: 32, 1>}, {pipeline_mode = #tpu.pipeline_mode<synchronous>, transform_indices = @transform_3, window_bounds = array<i64: 16, 32>}, {pipeline_mode = #tpu.pipeline_mode<synchronous>, transform_indices = @transform_4, window_bounds = array<i64: 16, 1>}, {pipeline_mode = #tpu.pipeline_mode<synchronous>, transform_indices = @transform_5, window_bounds = array<i64: 8, 16>}, {pipeline_mode = #tpu.pipeline_mode<synchronous>, transform_indices = @transform_6, window_bounds = array<i64: 8, 1>}, {transform_indices = @transform_7, window_bounds = array<i64: 8, 1>}]} {
    %c0 = arith.constant 0 : index
    %c0_0 = arith.constant 0 : index
    %0 = vector.load %arg1[%c0, %c0_0] : memref<64x1xf32, #tpu.memory_space<vmem>>, vector<64x1xf32>
    %c0_1 = arith.constant 0 : index
    %c0_2 = arith.constant 0 : index
    %1 = vector.load %arg2[%c0_1, %c0_2] : memref<32x64xf32, #tpu.memory_space<vmem>>, vector<32x64xf32>
    %cst = arith.constant dense<0.000000e+00> : vector<32x1xf32>
    %2 = tpu.matmul %1, %0, %cst {dimension_numbers = #tpu.dot_dimension_numbers<[1], [0], [0], [1], [0, 0, 1, 1], [], []>} : vector<32x64xf32>, vector<64x1xf32>, vector<32x1xf32> -> vector<32x1xf32>
    %c0_3 = arith.constant 0 : index
    %c0_4 = arith.constant 0 : index
    %3 = vector.load %arg3[%c0_3, %c0_4] : memref<32x1xf32, #tpu.memory_space<vmem>>, vector<32x1xf32>
    %4 = arith.addf %2, %3 : vector<32x1xf32>
    %cst_5 = arith.constant 5.000000e-01 : f32
    %5 = vector.broadcast %cst_5 : f32 to vector<32x1xf32>
    %6 = arith.mulf %4, %5 : vector<32x1xf32>
    %cst_6 = arith.constant 0.707106769 : f32
    %7 = vector.broadcast %cst_6 : f32 to vector<32x1xf32>
    %8 = arith.mulf %4, %7 : vector<32x1xf32>
    %9 = math.erf %8 : vector<32x1xf32>
    %cst_7 = arith.constant 1.000000e+00 : f32
    %10 = vector.broadcast %cst_7 : f32 to vector<32x1xf32>
    %11 = arith.addf %9, %10 : vector<32x1xf32>
    %12 = arith.mulf %6, %11 : vector<32x1xf32>
    %c0_8 = arith.constant 0 : index
    %c0_9 = arith.constant 0 : index
    %13 = vector.load %arg4[%c0_8, %c0_9] : memref<16x32xf32, #tpu.memory_space<vmem>>, vector<16x32xf32>
    %cst_10 = arith.constant dense<0.000000e+00> : vector<16x1xf32>
    %14 = tpu.matmul %13, %12, %cst_10 {dimension_numbers = #tpu.dot_dimension_numbers<[1], [0], [0], [1], [0, 0, 1, 1], [], []>} : vector<16x32xf32>, vector<32x1xf32>, vector<16x1xf32> -> vector<16x1xf32>
    %c0_11 = arith.constant 0 : index
    %c0_12 = arith.constant 0 : index
    %15 = vector.load %arg5[%c0_11, %c0_12] : memref<16x1xf32, #tpu.memory_space<vmem>>, vector<16x1xf32>
    %16 = arith.addf %14, %15 : vector<16x1xf32>
    %cst_13 = arith.constant 5.000000e-01 : f32
    %17 = vector.broadcast %cst_13 : f32 to vector<16x1xf32>
    %18 = arith.mulf %16, %17 : vector<16x1xf32>
    %cst_14 = arith.constant 0.707106769 : f32
    %19 = vector.broadcast %cst_14 : f32 to vector<16x1xf32>
    %20 = arith.mulf %16, %19 : vector<16x1xf32>
    %21 = math.erf %20 : vector<16x1xf32>
    %cst_15 = arith.constant 1.000000e+00 : f32
    %22 = vector.broadcast %cst_15 : f32 to vector<16x1xf32>
    %23 = arith.addf %21, %22 : vector<16x1xf32>
    %24 = arith.mulf %18, %23 : vector<16x1xf32>
    %c0_16 = arith.constant 0 : index
    %c0_17 = arith.constant 0 : index
    %25 = vector.load %arg6[%c0_16, %c0_17] : memref<8x16xf32, #tpu.memory_space<vmem>>, vector<8x16xf32>
    %cst_18 = arith.constant dense<0.000000e+00> : vector<8x1xf32>
    %26 = tpu.matmul %25, %24, %cst_18 {dimension_numbers = #tpu.dot_dimension_numbers<[1], [0], [0], [1], [0, 0, 1, 1], [], []>} : vector<8x16xf32>, vector<16x1xf32>, vector<8x1xf32> -> vector<8x1xf32>
    %c0_19 = arith.constant 0 : index
    %c0_20 = arith.constant 0 : index
    %27 = vector.load %arg7[%c0_19, %c0_20] : memref<8x1xf32, #tpu.memory_space<vmem>>, vector<8x1xf32>
    %28 = arith.addf %26, %27 : vector<8x1xf32>
    %cst_21 = arith.constant 5.000000e-01 : f32
    %29 = vector.broadcast %cst_21 : f32 to vector<8x1xf32>
    %30 = arith.mulf %28, %29 : vector<8x1xf32>
    %cst_22 = arith.constant 0.707106769 : f32
    %31 = vector.broadcast %cst_22 : f32 to vector<8x1xf32>
    %32 = arith.mulf %28, %31 : vector<8x1xf32>
    %33 = math.erf %32 : vector<8x1xf32>
    %cst_23 = arith.constant 1.000000e+00 : f32
    %34 = vector.broadcast %cst_23 : f32 to vector<8x1xf32>
    %35 = arith.addf %33, %34 : vector<8x1xf32>
    %36 = arith.mulf %30, %35 : vector<8x1xf32>
    %c0_24 = arith.constant 0 : index
    %c0_25 = arith.constant 0 : index
    %37 = vector.load %arg8[%c0_24, %c0_25] : memref<8x1xf32, #tpu.memory_space<vmem>>, vector<8x1xf32>
    tpu.vector_store %arg8[%c0_24, %c0_25], %36 {strides = array<i32>} : memref<8x1xf32, #tpu.memory_space<vmem>>, vector<8x1xf32>,
    return
  }
  func.func @transform_0(%arg0: i32) -> (i32, i32) {
    %c0_i32 = arith.constant 0 : i32
    %c0_i32_0 = arith.constant 0 : i32
    return %c0_i32, %arg0 : i32, i32
  }
  func.func @transform_1(%arg0: i32) -> (i32, i32) {
    %c0_i32 = arith.constant 0 : i32
    %c0_i32_0 = arith.constant 0 : i32
    %c0_i32_1 = arith.constant 0 : i32
    return %c0_i32, %c0_i32_0 : i32, i32
  }
  func.func @transform_2(%arg0: i32) -> (i32, i32) {
    %c0_i32 = arith.constant 0 : i32
    %c0_i32_0 = arith.constant 0 : i32
    %c0_i32_1 = arith.constant 0 : i32
    return %c0_i32, %c0_i32_0 : i32, i32
  }
  func.func @transform_3(%arg0: i32) -> (i32, i32) {
    %c0_i32 = arith.constant 0 : i32
    %c0_i32_0 = arith.constant 0 : i32
    %c0_i32_1 = arith.constant 0 : i32
    return %c0_i32, %c0_i32_0 : i32, i32
  }
  func.func @transform_4(%arg0: i32) -> (i32, i32) {
    %c0_i32 = arith.constant 0 : i32
    %c0_i32_0 = arith.constant 0 : i32
    %c0_i32_1 = arith.constant 0 : i32
    return %c0_i32, %c0_i32_0 : i32, i32
  }
  func.func @transform_5(%arg0: i32) -> (i32, i32) {
    %c0_i32 = arith.constant 0 : i32
    %c0_i32_0 = arith.constant 0 : i32
    %c0_i32_1 = arith.constant 0 : i32
    return %c0_i32, %c0_i32_0 : i32, i32
  }
  func.func @transform_6(%arg0: i32) -> (i32, i32) {
    %c0_i32 = arith.constant 0 : i32
    %c0_i32_0 = arith.constant 0 : i32
    %c0_i32_1 = arith.constant 0 : i32
    return %c0_i32, %c0_i32_0 : i32, i32
  }
  func.func @transform_7(%arg0: i32) -> (i32, i32) {
    %c0_i32 = arith.constant 0 : i32
    %c0_i32_0 = arith.constant 0 : i32
    return %c0_i32, %arg0 : i32, i32
  }
}

</mosaic_0001>

<llo_original>
// kernel: tpu_custom_call.1
$region0: #{tpu_custom_call.1}
  #allocation0 [shape = 'u32[]', space=smem, size = 0x4, offset = 0x4, fixed_abs, tag = 'smem constant byte address 0x4 - core index']
  #allocation1 [shape = 'u32[144,128]{1,0:T(1,128)}', space=vmem, size = 0x12000, scoped, tag = 'internal scratch']
  %s0 = inlined_call_operand.vmem [shape: f32[64,1], index: 0, kind: input, shape index: {}]
  %s1 = inlined_call_operand.vmem [shape: f32[32,64], index: 1, kind: input, shape index: {}]
  %s2 = inlined_call_operand.vmem [shape: f32[32,1], index: 2, kind: input, shape index: {}]
  %s3 = inlined_call_operand.vmem [shape: f32[16,32], index: 3, kind: input, shape index: {}]
  %s4 = inlined_call_operand.vmem [shape: f32[16,1], index: 4, kind: input, shape index: {}]
  %s5 = inlined_call_operand.vmem [shape: f32[8,16], index: 5, kind: input, shape index: {}]
  %s6 = inlined_call_operand.vmem [shape: f32[8,1], index: 6, kind: input, shape index: {}]
  %s7 = inlined_call_operand.vmem [shape: f32[8,1], index: 7, kind: output, shape index: {}]
  %s8 = sld [smem:[#allocation0]]
  $region38: #{tpu_custom_call.1} parent=0
    _
  %s10 = ssub.s32 1, %s8
  %s11 = scalar_select 0, %s10, %s8
  // Predicated region
  $region2: #{tpu_custom_call.1} parent=0 // pred_check
    _
  $region3: #{tpu_custom_call.1} parent=0 // pred_check_branch
    %13 = sbr.rel (0) target = $region5
  $region4: #{tpu_custom_call.1} parent=0 // pred_region
    _
  $region5: #{tpu_custom_call.1} parent=0 // pred_fallthru
    _
  // Predicated region
  $region6: #{tpu_custom_call.1} parent=0 // pred_check
    _
  $region7: #{tpu_custom_call.1} parent=0 // pred_check_branch
    %15 = sbr.rel (0) target = $region9
  $region8: #{tpu_custom_call.1} parent=0 // pred_region
    _
  $region9: #{tpu_custom_call.1} parent=0 // pred_fallthru
    _
  // Predicated region
  $region10: #{tpu_custom_call.1} parent=0 // pred_check
    _
  $region11: #{tpu_custom_call.1} parent=0 // pred_check_branch
    %17 = sbr.rel (0) target = $region13
  $region12: #{tpu_custom_call.1} parent=0 // pred_region
    _
  $region13: #{tpu_custom_call.1} parent=0 // pred_fallthru
    _
  // Predicated region
  $region14: #{tpu_custom_call.1} parent=0 // pred_check
    _
  $region15: #{tpu_custom_call.1} parent=0 // pred_check_branch
    %19 = sbr.rel (0) target = $region17
  $region16: #{tpu_custom_call.1} parent=0 // pred_region
    _
  $region17: #{tpu_custom_call.1} parent=0 // pred_fallthru
    _
  // Predicated region
  $region18: #{tpu_custom_call.1} parent=0 // pred_check
    _
  $region19: #{tpu_custom_call.1} parent=0 // pred_check_branch
    %21 = sbr.rel (0) target = $region21
  $region20: #{tpu_custom_call.1} parent=0 // pred_region
    _
  $region21: #{tpu_custom_call.1} parent=0 // pred_fallthru
    _
  // Predicated region
  $region22: #{tpu_custom_call.1} parent=0 // pred_check
    _
  $region23: #{tpu_custom_call.1} parent=0 // pred_check_branch
    %23 = sbr.rel (0) target = $region25
  $region24: #{tpu_custom_call.1} parent=0 // pred_region
    _
  $region25: #{tpu_custom_call.1} parent=0 // pred_fallthru
    _
  // Predicated region
  $region26: #{tpu_custom_call.1} parent=0 // pred_check
    _
  $region27: #{tpu_custom_call.1} parent=0 // pred_check_branch
    %25 = sbr.rel (0) target = $region29
  $region28: #{tpu_custom_call.1} parent=0 // pred_region
    _
  $region29: #{tpu_custom_call.1} parent=0 // pred_fallthru
    _
  %v26 = vld [vmem:[%s0] sm:$0xff]
  %v27 = vld [vmem:[%s0 + $0x8] sm:$0xff]
  %v28 = vld [vmem:[%s0 + $0x10] sm:$0xff]
  %v29 = vld [vmem:[%s0 + $0x18] sm:$0xff]
  %v30 = vld [vmem:[%s0 + $0x20] sm:$0xff]
  %v31 = vld [vmem:[%s0 + $0x28] sm:$0xff]
  %v32 = vld [vmem:[%s0 + $0x30] sm:$0xff]
  %v33 = vld [vmem:[%s0 + $0x38] sm:$0xff]
  %v34 = vld [vmem:[%s1] sm:$0xff]
  %v35 = vld [vmem:[%s1 + $0x8] sm:$0xff]
  %v36 = vld [vmem:[%s1 + $0x10] sm:$0xff]
  %v37 = vld [vmem:[%s1 + $0x18] sm:$0xff]
  %v38 = vld [vmem:[%s2] sm:$0xff]
  %v39 = vld [vmem:[%s2 + $0x8] sm:$0xff]
  %v40 = vld [vmem:[%s2 + $0x10] sm:$0xff]
  %v41 = vld [vmem:[%s2 + $0x18] sm:$0xff]
  %vm42 = vcmask 523264
  %v44 = vsel %vm42, %v34, 0
  %v47 = vsel %vm42, %v35, 0
  %v50 = vsel %vm42, %v36, 0
  %v53 = vsel %vm42, %v37, 0
  %55 = vmatprep.subr.mxu0 0.0
  %56 = vmatpush1.msra.mxu0 0.0
  %57 = vmatprep.subr.mxu0 0.0
  %58 = vmatpush1.msra.mxu0 0.0
  %59 = vmatprep.subr.mxu0 0.0
  %60 = vmatpush1.msra.mxu0 0.0
  %61 = vmatprep.subr.mxu0 0.0
  %62 = vmatpush1.msra.mxu0 0.0
  %63 = vmatprep.subr.mxu0 0.0
  %64 = vmatpush1.msra.mxu0 0.0
  %65 = vmatprep.subr.mxu0 0.0
  %66 = vmatpush1.msra.mxu0 0.0
  %67 = vmatprep.subr.mxu0 0.0
  %68 = vmatpush1.msra.mxu0 0.0
  %69 = vmatprep.subr.mxu0 0.0
  %70 = vmatpush1.msra.mxu0 0.0
  %71 = vmatprep.subr.mxu0 0.0
  %72 = vmatpush1.msra.mxu0 %v33
  %73 = vmatprep.subr.mxu0 0.0
  %74 = vmatpush1.msra.mxu0 %v32
  %75 = vmatprep.subr.mxu0 0.0
  %76 = vmatpush1.msra.mxu0 %v31
  %77 = vmatprep.subr.mxu0 0.0
  %78 = vmatpush1.msra.mxu0 %v30
  %79 = vmatprep.subr.mxu0 0.0
  %80 = vmatpush1.msra.mxu0 %v29
  %81 = vmatprep.subr.mxu0 0.0
  %82 = vmatpush1.msra.mxu0 %v28
  %83 = vmatprep.subr.mxu0 0.0
  %84 = vmatpush1.msra.mxu0 %v27
  %85 = vmatprep.subr.mxu0 0.0
  %86 = vmatpush1.msra.mxu0 %v26
  %87 = vmatprep.subr.mxu0 0.0
  %88 = vmatpush2.msra.mxu0 0.0
  %89 = vmatprep.subr.mxu0 0.0
  %90 = vmatpush2.msra.mxu0 0.0
  %91 = vmatprep.subr.mxu0 0.0
  %92 = vmatpush2.msra.mxu0 0.0
  %93 = vmatprep.subr.mxu0 0.0
  %94 = vmatpush2.msra.mxu0 0.0
  %95 = vmatprep.subr.mxu0 0.0
  %96 = vmatpush2.msra.mxu0 0.0
  %97 = vmatprep.subr.mxu0 0.0
  %98 = vmatpush2.msra.mxu0 0.0
  %99 = vmatprep.subr.mxu0 0.0
  %100 = vmatpush2.msra.mxu0 0.0
  %101 = vmatprep.subr.mxu0 0.0
  %102 = vmatpush2.msra.mxu0 0.0
  %103 = vmatprep.subr.mxu0 0.0
  %104 = vmatpush2.msra.mxu0 0.0
  %105 = vmatprep.subr.mxu0 0.0
  %106 = vmatpush2.msra.mxu0 0.0
  %107 = vmatprep.subr.mxu0 0.0
  %108 = vmatpush2.msra.mxu0 0.0
  %109 = vmatprep.subr.mxu0 0.0
  %110 = vmatpush2.msra.mxu0 0.0
  %111 = vmatprep.subr.mxu0 0.0
  %112 = vmatpush2.msra.mxu0 0.0
  %113 = vmatprep.subr.mxu0 0.0
  %114 = vmatpush2.msra.mxu0 0.0
  %115 = vmatprep.subr.mxu0 0.0
  %116 = vmatpush2.msra.mxu0 0.0
  %117 = vmatprep.subr.mxu0 0.0
  %118 = vmatpush2.msra.mxu0 0.0
  %119 = vmatprep.mubr.f32.mxu0 0.0
  %120 = vmatmul.mubr.f32.gmra.mxu0 %v44
  %v121 = vpop.f32.mrf.mxu0
  %v122 = vadd.f32 %v38, %v121
  %v123 = vpop.f32.mrf.mxu0
  %124 = vmatprep.mubr.f32.mxu0 0.0
  %125 = vmatmul.mubr.f32.gmra.mxu0 %v47
  %v126 = vpop.f32.mrf.mxu0
  %v127 = vadd.f32 %v39, %v126
  %v128 = vpop.f32.mrf.mxu0
  %129 = vmatprep.mubr.f32.mxu0 0.0
  %130 = vmatmul.mubr.f32.gmra.mxu0 %v50
  %v131 = vpop.f32.mrf.mxu0
  %v132 = vadd.f32 %v40, %v131
  %v133 = vpop.f32.mrf.mxu0
  %134 = vmatprep.mubr.f32.mxu0 0.0
  %135 = vmatmul.mubr.f32.gmra.mxu0 %v53
  %v136 = vpop.f32.mrf.mxu0
  %v137 = vadd.f32 %v41, %v136
  %v138 = vpop.f32.mrf.mxu0
  %139 = vdwg.mxu0
  %v140 = vmul.f32 %v122, 0.5
  %v141 = vmul.f32 %v127, 0.5
  %v142 = vmul.f32 %v132, 0.5
  %v143 = vmul.f32 %v137, 0.5
  %v144 = vmul.f32 %v122, 0.70710677
  %v145 = vmul.f32 %v127, 0.70710677
  %v146 = vmul.f32 %v132, 0.70710677
  %v147 = vmul.f32 %v137, 0.70710677
  %v148 = verf.f32.pop %v144
  %v149 = verf.f32.pop %v145
  %v150 = verf.f32.pop %v146
  %v151 = verf.f32.pop %v147
  %v152 = vadd.f32 %v148, 1.0
  %v153 = vadd.f32 %v149, 1.0
  %v154 = vadd.f32 %v150, 1.0
  %v155 = vadd.f32 %v151, 1.0
  %v156 = vmul.f32 %v140, %v152
  %v157 = vmul.f32 %v141, %v153
  %v158 = vmul.f32 %v142, %v154
  %v159 = vmul.f32 %v143, %v155
  %v160 = vld [vmem:[%s3] sm:$0xff]
  %v161 = vld [vmem:[%s3 + $0x8] sm:$0xff]
  %v162 = vld [vmem:[%s4] sm:$0xff]
  %v163 = vld [vmem:[%s4 + $0x8] sm:$0xff]
  %vm164 = vcmask 261120
  %v166 = vsel %vm164, %v160, 0
  %v169 = vsel %vm164, %v161, 0
  %171 = vmatprep.subr.mxu0 0.0
  %172 = vmatpush1.msra.mxu0 0.0
  %173 = vmatprep.subr.mxu0 0.0
  %174 = vmatpush1.msra.mxu0 0.0
  %175 = vmatprep.subr.mxu0 0.0
  %176 = vmatpush1.msra.mxu0 0.0
  %177 = vmatprep.subr.mxu0 0.0
  %178 = vmatpush1.msra.mxu0 0.0
  %179 = vmatprep.subr.mxu0 0.0
  %180 = vmatpush1.msra.mxu0 0.0
  %181 = vmatprep.subr.mxu0 0.0
  %182 = vmatpush1.msra.mxu0 0.0
  %183 = vmatprep.subr.mxu0 0.0
  %184 = vmatpush1.msra.mxu0 0.0
  %185 = vmatprep.subr.mxu0 0.0
  %186 = vmatpush1.msra.mxu0 0.0
  %187 = vmatprep.subr.mxu0 0.0
  %188 = vmatpush1.msra.mxu0 0.0
  %189 = vmatprep.subr.mxu0 0.0
  %190 = vmatpush1.msra.mxu0 0.0
  %191 = vmatprep.subr.mxu0 0.0
  %192 = vmatpush1.msra.mxu0 0.0
  %193 = vmatprep.subr.mxu0 0.0
  %194 = vmatpush1.msra.mxu0 0.0
  %195 = vmatprep.subr.mxu0 0.0
  %196 = vmatpush1.msra.mxu0 %v159
  %197 = vmatprep.subr.mxu0 0.0
  %198 = vmatpush1.msra.mxu0 %v158
  %199 = vmatprep.subr.mxu0 0.0
  %200 = vmatpush1.msra.mxu0 %v157
  %201 = vmatprep.subr.mxu0 0.0
  %202 = vmatpush1.msra.mxu0 %v156
  %203 = vmatprep.subr.mxu0 0.0
  %204 = vmatpush2.msra.mxu0 0.0
  %205 = vmatprep.subr.mxu0 0.0
  %206 = vmatpush2.msra.mxu0 0.0
  %207 = vmatprep.subr.mxu0 0.0
  %208 = vmatpush2.msra.mxu0 0.0
  %209 = vmatprep.subr.mxu0 0.0
  %210 = vmatpush2.msra.mxu0 0.0
  %211 = vmatprep.subr.mxu0 0.0
  %212 = vmatpush2.msra.mxu0 0.0
  %213 = vmatprep.subr.mxu0 0.0
  %214 = vmatpush2.msra.mxu0 0.0
  %215 = vmatprep.subr.mxu0 0.0
  %216 = vmatpush2.msra.mxu0 0.0
  %217 = vmatprep.subr.mxu0 0.0
  %218 = vmatpush2.msra.mxu0 0.0
  %219 = vmatprep.subr.mxu0 0.0
  %220 = vmatpush2.msra.mxu0 0.0
  %221 = vmatprep.subr.mxu0 0.0
  %222 = vmatpush2.msra.mxu0 0.0
  %223 = vmatprep.subr.mxu0 0.0
  %224 = vmatpush2.msra.mxu0 0.0
  %225 = vmatprep.subr.mxu0 0.0
  %226 = vmatpush2.msra.mxu0 0.0
  %227 = vmatprep.subr.mxu0 0.0
  %228 = vmatpush2.msra.mxu0 0.0
  %229 = vmatprep.subr.mxu0 0.0
  %230 = vmatpush2.msra.mxu0 0.0
  %231 = vmatprep.subr.mxu0 0.0
  %232 = vmatpush2.msra.mxu0 0.0
  %233 = vmatprep.subr.mxu0 0.0
  %234 = vmatpush2.msra.mxu0 0.0
  %235 = vmatprep.mubr.f32.mxu0 0.0
  %236 = vmatmul.mubr.f32.gmra.mxu0 %v166
  %v237 = vpop.f32.mrf.mxu0
  %v238 = vadd.f32 %v162, %v237
  %v239 = vpop.f32.mrf.mxu0
  %240 = vmatprep.mubr.f32.mxu0 0.0
  %241 = vmatmul.mubr.f32.gmra.mxu0 %v169
  %v242 = vpop.f32.mrf.mxu0
  %v243 = vadd.f32 %v163, %v242
  %v244 = vpop.f32.mrf.mxu0
  %245 = vdwg.mxu0
  %v246 = vmul.f32 %v238, 0.5
  %v247 = vmul.f32 %v243, 0.5
  %v248 = vmul.f32 %v238, 0.70710677
  %v249 = vmul.f32 %v243, 0.70710677
  %v250 = verf.f32.pop %v248
  %v251 = verf.f32.pop %v249
  %v252 = vadd.f32 %v250, 1.0
  %v253 = vadd.f32 %v251, 1.0
  %v254 = vmul.f32 %v246, %v252
  %v255 = vmul.f32 %v247, %v253
  %v256 = vld [vmem:[%s5] sm:$0xff]
  %v257 = vld [vmem:[%s6] sm:$0xff]
  %vm258 = vcmask 130048
  %v260 = vsel %vm258, %v256, 0
  %262 = vmatprep.subr.mxu0 0.0
  %263 = vmatpush1.msra.mxu0 0.0
  %264 = vmatprep.subr.mxu0 0.0
  %265 = vmatpush1.msra.mxu0 0.0
  %266 = vmatprep.subr.mxu0 0.0
  %267 = vmatpush1.msra.mxu0 0.0
  %268 = vmatprep.subr.mxu0 0.0
  %269 = vmatpush1.msra.mxu0 0.0
  %270 = vmatprep.subr.mxu0 0.0
  %271 = vmatpush1.msra.mxu0 0.0
  %272 = vmatprep.subr.mxu0 0.0
  %273 = vmatpush1.msra.mxu0 0.0
  %274 = vmatprep.subr.mxu0 0.0
  %275 = vmatpush1.msra.mxu0 0.0
  %276 = vmatprep.subr.mxu0 0.0
  %277 = vmatpush1.msra.mxu0 0.0
  %278 = vmatprep.subr.mxu0 0.0
  %279 = vmatpush1.msra.mxu0 0.0
  %280 = vmatprep.subr.mxu0 0.0
  %281 = vmatpush1.msra.mxu0 0.0
  %282 = vmatprep.subr.mxu0 0.0
  %283 = vmatpush1.msra.mxu0 0.0
  %284 = vmatprep.subr.mxu0 0.0
  %285 = vmatpush1.msra.mxu0 0.0
  %286 = vmatprep.subr.mxu0 0.0
  %287 = vmatpush1.msra.mxu0 0.0
  %288 = vmatprep.subr.mxu0 0.0
  %289 = vmatpush1.msra.mxu0 0.0
  %290 = vmatprep.subr.mxu0 0.0
  %291 = vmatpush1.msra.mxu0 %v255
  %292 = vmatprep.subr.mxu0 0.0
  %293 = vmatpush1.msra.mxu0 %v254
  %294 = vmatprep.subr.mxu0 0.0
  %295 = vmatpush2.msra.mxu0 0.0
  %296 = vmatprep.subr.mxu0 0.0
  %297 = vmatpush2.msra.mxu0 0.0
  %298 = vmatprep.subr.mxu0 0.0
  %299 = vmatpush2.msra.mxu0 0.0
  %300 = vmatprep.subr.mxu0 0.0
  %301 = vmatpush2.msra.mxu0 0.0
  %302 = vmatprep.subr.mxu0 0.0
  %303 = vmatpush2.msra.mxu0 0.0
  %304 = vmatprep.subr.mxu0 0.0
  %305 = vmatpush2.msra.mxu0 0.0
  %306 = vmatprep.subr.mxu0 0.0
  %307 = vmatpush2.msra.mxu0 0.0
  %308 = vmatprep.subr.mxu0 0.0
  %309 = vmatpush2.msra.mxu0 0.0
  %310 = vmatprep.subr.mxu0 0.0
  %311 = vmatpush2.msra.mxu0 0.0
  %312 = vmatprep.subr.mxu0 0.0
  %313 = vmatpush2.msra.mxu0 0.0
  %314 = vmatprep.subr.mxu0 0.0
  %315 = vmatpush2.msra.mxu0 0.0
  %316 = vmatprep.subr.mxu0 0.0
  %317 = vmatpush2.msra.mxu0 0.0
  %318 = vmatprep.subr.mxu0 0.0
  %319 = vmatpush2.msra.mxu0 0.0
  %320 = vmatprep.subr.mxu0 0.0
  %321 = vmatpush2.msra.mxu0 0.0
  %322 = vmatprep.subr.mxu0 0.0
  %323 = vmatpush2.msra.mxu0 0.0
  %324 = vmatprep.subr.mxu0 0.0
  %325 = vmatpush2.msra.mxu0 0.0
  %326 = vmatprep.mubr.f32.mxu0 0.0
  %327 = vmatmul.mubr.f32.gmra.mxu0 %v260
  %v328 = vpop.f32.mrf.mxu0
  %v329 = vadd.f32 %v257, %v328
  %v330 = vpop.f32.mrf.mxu0
  %331 = vdwg.mxu0
  %v332 = vmul.f32 %v329, 0.5
  %v333 = vmul.f32 %v329, 0.70710677
  %v334 = verf.f32.pop %v333
  %v335 = vadd.f32 %v334, 1.0
  %v336 = vmul.f32 %v332, %v335
  %vm337 = vcmask 7168
  %338 = vst.msk [vmem:[%s7] sm:$0xff] %vm337, %v336
  // Predicated region
  $region30: #{tpu_custom_call.1} parent=0 // pred_check
    _
  $region31: #{tpu_custom_call.1} parent=0 // pred_check_branch
    %340 = sbr.rel (0) target = $region33
  $region32: #{tpu_custom_call.1} parent=0 // pred_region
    _
  $region33: #{tpu_custom_call.1} parent=0 // pred_fallthru
    _
  // Predicated region
  $region34: #{tpu_custom_call.1} parent=0 // pred_check
    _
  $region35: #{tpu_custom_call.1} parent=0 // pred_check_branch
    %342 = sbr.rel (0) target = $region37
  $region36: #{tpu_custom_call.1} parent=0 // pred_region
    _
  $region37: #{tpu_custom_call.1} parent=0 // pred_fallthru
    _

</llo_original>
